<compile_context>
chip_gen: v7x
topology: tpu7x:2x2x1
jax: 0.10.0
libtpu: 0.0.40
codegen_flags: <defaults>
</compile_context>

<pallas_src>
import math
from functools import partial

import jax
import jax.numpy as jnp
from jax.experimental import pallas as pl
from jax.experimental.pallas import tpu as pltpu


# ---------------------------------------------------------------------------
# Kernel
# ---------------------------------------------------------------------------
def critic_kernel(s_ref, a_ref, p_ref, o_ref, *, SD, AD, H, off):
    """One batch tile of the critic MLP.

    s_ref : (TB, SD)    state tile (f32, pipelined)
    a_ref : (TB, AD)    action tile (f32, pipelined)
    p_ref : (rows, H)   packed parameter slab (VMEM-resident across the grid)
    o_ref : (TB, 1)     Q-value column for this tile
    """
    f32 = jnp.float32
    s = s_ref[...]                                     # (TB, SD)
    a = a_ref[...]                                     # (TB, AD)

    # Parameter slices (static, 8-aligned sublane offsets).
    w1 = p_ref[pl.ds(off["w1"], SD), :]                # (SD, H)
    w2q = p_ref[pl.ds(off["w2q"], H), :]               # (H, H)
    w2a = p_ref[pl.ds(off["w2a"], AD), :]              # (AD, H)
    w3 = p_ref[pl.ds(off["w3"], H), :]                 # (H, H)
    b1 = p_ref[pl.ds(off["b1"], 1), :]                 # (1, H)
    b2 = p_ref[pl.ds(off["b2"], 1), :]
    b3 = p_ref[pl.ds(off["b3"], 1), :]
    w4 = p_ref[pl.ds(off["w4"], 1), :]                 # (1, H) fc4 weight row
    b4 = p_ref[pl.ds(off["b4"], 1), :][:, :1]          # (1, 1) fc4 bias

    # fc1 + ReLU
    q = jnp.maximum(jnp.dot(s, w1, preferred_element_type=f32) + b1, 0.0)

    # fc2 over concat([q, action]) == q @ W2[:H] + action @ W2[H:] + b2.
    ta = jnp.dot(a, w2a, preferred_element_type=f32)
    q = jnp.maximum(jnp.dot(q, w2q, preferred_element_type=f32) + ta + b2, 0.0)

    # fc3 + ReLU
    q = jnp.maximum(jnp.dot(q, w3, preferred_element_type=f32) + b3, 0.0)

    # fc4 (N=1): VPU multiply + XLU lane reduction instead of a 1-wide MXU push.
    out = jnp.sum(q * w4, axis=-1, keepdims=True) + b4         # (TB, 1) f32
    o_ref[...] = out.astype(o_ref.dtype)


# ---------------------------------------------------------------------------
# Parameter construction / packing
# ---------------------------------------------------------------------------
def make_params(key, state_dim, action_dim, h1=64, h2=64, h3=64, e=0.003):
    """fanin_initialization-style params, stored (in, out) for x @ W."""
    assert h1 == h2 == h3, "packed slab assumes equal hidden widths"
    ks = jax.random.split(key, 8)

    def fanin(k, out_f, in_f):
        v = 1.0 / math.sqrt(in_f)
        w = jax.random.uniform(k, (out_f, in_f), jnp.float32, minval=-v, maxval=v)
        return w.T                                               # (in, out)

    def bias(k, n, fan_in):
        v = 1.0 / math.sqrt(fan_in)
        return jax.random.uniform(k, (1, n), jnp.float32, minval=-v, maxval=v)

    w1 = fanin(ks[0], h1, state_dim)                             # (sd, h1)
    b1 = bias(ks[1], h1, state_dim)
    w2 = fanin(ks[2], h2, h1 + action_dim)                       # (h1+ad, h2)
    w2q, w2a = w2[:h1], w2[h1:]
    b2 = bias(ks[3], h2, h1 + action_dim)
    w3 = fanin(ks[4], h3, h2)                                    # (h2, h3)
    b3 = bias(ks[5], h3, h2)
    w4 = jax.random.uniform(ks[6], (h3, 1), jnp.float32, minval=-e, maxval=e)
    b4 = jax.random.uniform(ks[7], (1, 1), jnp.float32, minval=-e, maxval=e)
    return dict(w1=w1, b1=b1, w2q=w2q, w2a=w2a, b2=b2, w3=w3, b3=b3, w4=w4, b4=b4)


def pack_params(params, state_dim, action_dim, h=64, dtype=jnp.float32):
    """Pack every weight/bias into one (rows, h) slab with 8-aligned segments."""

    def align8(n):
        return ((n + 7) // 8) * 8

    off, cur = {}, 0
    for name, nrows in (("w1", state_dim), ("w2q", h), ("w2a", action_dim),
                        ("w3", h), ("b1", 1), ("b2", 1), ("b3", 1),
                        ("w4", 1), ("b4", 1)):
        off[name] = cur
        cur = align8(cur + nrows)
    rows = cur

    slab = jnp.zeros((rows, h), jnp.float32)
    slab = slab.at[off["w1"]:off["w1"] + state_dim].set(params["w1"])
    slab = slab.at[off["w2q"]:off["w2q"] + h].set(params["w2q"])
    slab = slab.at[off["w2a"]:off["w2a"] + action_dim].set(params["w2a"])
    slab = slab.at[off["w3"]:off["w3"] + h].set(params["w3"])
    slab = slab.at[off["b1"]].set(params["b1"][0])
    slab = slab.at[off["b2"]].set(params["b2"][0])
    slab = slab.at[off["b3"]].set(params["b3"][0])
    slab = slab.at[off["w4"]].set(params["w4"][:, 0])
    slab = slab.at[off["b4"]].set(jnp.full((h,), params["b4"][0, 0]))
    layout = dict(off=off, rows=rows, H=h, SD=state_dim, AD=action_dim)
    return slab.astype(dtype), layout


# ---------------------------------------------------------------------------
# Wrapper
# ---------------------------------------------------------------------------
def critic_forward(state, action, params_slab, layout, *, block_b=512):
    """Q(state, action) -> (B, 1) f32.

    block_b: batch tile (tunable; sweep 512-2048 for large replay batches, and
    keep >= 2 grid steps on v7x so both TensorCores get work).
    """
    B, sd = state.shape
    ad = action.shape[1]
    SD, AD, H, rows = layout["SD"], layout["AD"], layout["H"], layout["rows"]
    assert (sd, ad) == (SD, AD)

    TB = block_b
    Bp = ((B + TB - 1) // TB) * TB
    if Bp != B:
        state = jnp.pad(state, ((0, Bp - B), (0, 0)))
        action = jnp.pad(action, ((0, Bp - B), (0, 0)))
    grid = (Bp // TB,)

    kernel = partial(critic_kernel, SD=SD, AD=AD, H=H, off=layout["off"])

    flops = 2 * Bp * (SD * H + (H + AD) * H + H * H + H)
    bytes_accessed = (params_slab.size * params_slab.dtype.itemsize
                      + Bp * (SD + AD) * state.dtype.itemsize   # inputs read
                      + Bp * 4)                                  # (Bp, 1) f32 out

    out = pl.pallas_call(
        kernel,
        out_shape=jax.ShapeDtypeStruct((Bp, 1), jnp.float32),
        grid=grid,
        in_specs=[
            pl.BlockSpec((TB, SD), lambda i: (i, 0)),     # pipelined state tile
            pl.BlockSpec((TB, AD), lambda i: (i, 0)),     # pipelined action tile
            pl.BlockSpec((rows, H), lambda i: (0, 0)),    # resident param slab
        ],
        out_specs=pl.BlockSpec((TB, 1), lambda i: (i, 0)),
        compiler_params=pltpu.CompilerParams(
            dimension_semantics=("parallel",)),           # megacore on v7x
        cost_estimate=pl.CostEstimate(
            flops=flops, transcendentals=0, bytes_accessed=bytes_accessed),
    )(state, action, params_slab)

    return out[:B]


# ---------------------------------------------------------------------------
# Pure-JAX f32 reference (mirrors the PyTorch module's forward)
# ---------------------------------------------------------------------------
def critic_reference(state, action, params):
    q = jax.nn.relu(state @ params["w1"] + params["b1"])
    q = jnp.concatenate([q, action], axis=1)
    w2 = jnp.concatenate([params["w2q"], params["w2a"]], axis=0)
    q = jax.nn.relu(q @ w2 + params["b2"])
    q = jax.nn.relu(q @ params["w3"] + params["b3"])
    return q @ params["w4"] + params["b4"]


# ---------------------------------------------------------------------------
if __name__ == "__main__":
    key = jax.random.PRNGKey(0)
    k_s, k_a, k_p = jax.random.split(key, 3)

    # Small smoke-test shapes; block_b=128 exercises grid=(2,) plus padding.
    batch, state_dim, action_dim = 200, 16, 4
    state = jax.random.normal(k_s, (batch, state_dim), jnp.float32)
    action = jax.random.normal(k_a, (batch, action_dim), jnp.float32)

    params = make_params(k_p, state_dim, action_dim)
    slab, layout = pack_params(params, state_dim, action_dim, h=64)

    fwd = jax.jit(lambda s, a, p: critic_forward(s, a, p, layout, block_b=128))
    out = jax.block_until_ready(fwd(state, action, slab))

    ref = critic_reference(state, action, params)
    assert out.shape == (batch, 1)
    max_err = float(jnp.max(jnp.abs(out - ref)))
    assert jnp.allclose(out, ref, atol=3e-3, rtol=2e-2), f"max abs err {max_err}"

    print("KERNEL_OK")
</pallas_src>

<mosaic_0001>
module attributes {stable_mosaic.version = 11 : i64} {
  func.func @critic_kernel(%arg0: i32, %arg1: memref<128x16xf32, #tpu.memory_space<vmem>>, %arg2: memref<128x4xf32, #tpu.memory_space<vmem>>, %arg3: memref<192x64xf32, #tpu.memory_space<vmem>>, %arg4: memref<128x1xf32, #tpu.memory_space<vmem>>) attributes {dimension_semantics = [#tpu.dimension_semantics<parallel>], iteration_bounds = array<i64: 2>, scalar_prefetch = 0 : i64, scratch_operands = 0 : i64, tpu.core_type = #tpu.core_type<tc>, window_params = [{transform_indices = @transform_0, window_bounds = array<i64: 128, 16>}, {transform_indices = @transform_1, window_bounds = array<i64: 128, 4>}, {pipeline_mode = #tpu.pipeline_mode<synchronous>, transform_indices = @transform_2, window_bounds = array<i64: 192, 64>}, {transform_indices = @transform_3, window_bounds = array<i64: 128, 1>}]} {
    %c0 = arith.constant 0 : index
    %c0_0 = arith.constant 0 : index
    %0 = vector.load %arg1[%c0, %c0_0] : memref<128x16xf32, #tpu.memory_space<vmem>>, vector<128x16xf32>
    %c0_1 = arith.constant 0 : index
    %c0_2 = arith.constant 0 : index
    %1 = vector.load %arg2[%c0_1, %c0_2] : memref<128x4xf32, #tpu.memory_space<vmem>>, vector<128x4xf32>
    %c0_3 = arith.constant 0 : index
    %c0_4 = arith.constant 0 : index
    %2 = vector.load %arg3[%c0_3, %c0_4] : memref<192x64xf32, #tpu.memory_space<vmem>>, vector<16x64xf32>
    %c16 = arith.constant 16 : index
    %c0_5 = arith.constant 0 : index
    %3 = vector.load %arg3[%c16, %c0_5] : memref<192x64xf32, #tpu.memory_space<vmem>>, vector<64x64xf32>
    %c80 = arith.constant 80 : index
    %c0_6 = arith.constant 0 : index
    %4 = vector.load %arg3[%c80, %c0_6] : memref<192x64xf32, #tpu.memory_space<vmem>>, vector<4x64xf32>
    %c88 = arith.constant 88 : index
    %c0_7 = arith.constant 0 : index
    %5 = vector.load %arg3[%c88, %c0_7] : memref<192x64xf32, #tpu.memory_space<vmem>>, vector<64x64xf32>
    %c152 = arith.constant 152 : index
    %c0_8 = arith.constant 0 : index
    %6 = vector.load %arg3[%c152, %c0_8] : memref<192x64xf32, #tpu.memory_space<vmem>>, vector<1x64xf32>
    %c160 = arith.constant 160 : index
    %c0_9 = arith.constant 0 : index
    %7 = vector.load %arg3[%c160, %c0_9] : memref<192x64xf32, #tpu.memory_space<vmem>>, vector<1x64xf32>
    %c168 = arith.constant 168 : index
    %c0_10 = arith.constant 0 : index
    %8 = vector.load %arg3[%c168, %c0_10] : memref<192x64xf32, #tpu.memory_space<vmem>>, vector<1x64xf32>
    %c176 = arith.constant 176 : index
    %c0_11 = arith.constant 0 : index
    %9 = vector.load %arg3[%c176, %c0_11] : memref<192x64xf32, #tpu.memory_space<vmem>>, vector<1x64xf32>
    %c184 = arith.constant 184 : index
    %c0_12 = arith.constant 0 : index
    %10 = vector.load %arg3[%c184, %c0_12] : memref<192x64xf32, #tpu.memory_space<vmem>>, vector<1x64xf32>
    %11 = vector.extract_strided_slice %10 {offsets = [0, 0], sizes = [1, 1], strides = [1, 1]} : vector<1x64xf32> to vector<1x1xf32>
    %cst = arith.constant dense<0.000000e+00> : vector<128x64xf32>
    %12 = tpu.matmul %0, %2, %cst {dimension_numbers = #tpu.dot_dimension_numbers<[1], [0], [0], [1], [0, 0, 1, 1], [], []>} : vector<128x16xf32>, vector<16x64xf32>, vector<128x64xf32> -> vector<128x64xf32>
    %13 = vector.broadcast %6 : vector<1x64xf32> to vector<128x64xf32>
    %14 = arith.addf %12, %13 : vector<128x64xf32>
    %cst_13 = arith.constant 0.000000e+00 : f32
    %15 = vector.broadcast %cst_13 : f32 to vector<128x64xf32>
    %16 = arith.maximumf %14, %15 : vector<128x64xf32>
    %cst_14 = arith.constant dense<0.000000e+00> : vector<128x64xf32>
    %17 = tpu.matmul %1, %4, %cst_14 {dimension_numbers = #tpu.dot_dimension_numbers<[1], [0], [0], [1], [0, 0, 1, 1], [], []>} : vector<128x4xf32>, vector<4x64xf32>, vector<128x64xf32> -> vector<128x64xf32>
    %cst_15 = arith.constant dense<0.000000e+00> : vector<128x64xf32>
    %18 = tpu.matmul %16, %3, %cst_15 {dimension_numbers = #tpu.dot_dimension_numbers<[1], [0], [0], [1], [0, 0, 1, 1], [], []>} : vector<128x64xf32>, vector<64x64xf32>, vector<128x64xf32> -> vector<128x64xf32>
    %19 = arith.addf %18, %17 : vector<128x64xf32>
    %20 = vector.broadcast %7 : vector<1x64xf32> to vector<128x64xf32>
    %21 = arith.addf %19, %20 : vector<128x64xf32>
    %cst_16 = arith.constant 0.000000e+00 : f32
    %22 = vector.broadcast %cst_16 : f32 to vector<128x64xf32>
    %23 = arith.maximumf %21, %22 : vector<128x64xf32>
    %cst_17 = arith.constant dense<0.000000e+00> : vector<128x64xf32>
    %24 = tpu.matmul %23, %5, %cst_17 {dimension_numbers = #tpu.dot_dimension_numbers<[1], [0], [0], [1], [0, 0, 1, 1], [], []>} : vector<128x64xf32>, vector<64x64xf32>, vector<128x64xf32> -> vector<128x64xf32>
    %25 = vector.broadcast %8 : vector<1x64xf32> to vector<128x64xf32>
    %26 = arith.addf %24, %25 : vector<128x64xf32>
    %cst_18 = arith.constant 0.000000e+00 : f32
    %27 = vector.broadcast %cst_18 : f32 to vector<128x64xf32>
    %28 = arith.maximumf %26, %27 : vector<128x64xf32>
    %29 = vector.broadcast %9 : vector<1x64xf32> to vector<128x64xf32>
    %30 = arith.mulf %28, %29 : vector<128x64xf32>
    %cst_19 = arith.constant dense<0.000000e+00> : vector<128xf32>
    %31 = vector.multi_reduction <add>, %30, %cst_19 [1] : vector<128x64xf32> to vector<128xf32>
    %32 = vector.shape_cast %31 : vector<128xf32> to vector<128x1xf32>
    %33 = vector.broadcast %11 : vector<1x1xf32> to vector<128x1xf32>
    %34 = arith.addf %32, %33 : vector<128x1xf32>
    %c0_20 = arith.constant 0 : index
    %c0_21 = arith.constant 0 : index
    %35 = vector.load %arg4[%c0_20, %c0_21] : memref<128x1xf32, #tpu.memory_space<vmem>>, vector<128x1xf32>
    tpu.vector_store %arg4[%c0_20, %c0_21], %34 {strides = array<i32>} : memref<128x1xf32, #tpu.memory_space<vmem>>, vector<128x1xf32>,
    return
  }
  func.func @transform_0(%arg0: i32) -> (i32, i32) {
    %c0_i32 = arith.constant 0 : i32
    %c0_i32_0 = arith.constant 0 : i32
    return %arg0, %c0_i32 : i32, i32
  }
  func.func @transform_1(%arg0: i32) -> (i32, i32) {
    %c0_i32 = arith.constant 0 : i32
    %c0_i32_0 = arith.constant 0 : i32
    return %arg0, %c0_i32 : i32, i32
  }
  func.func @transform_2(%arg0: i32) -> (i32, i32) {
    %c0_i32 = arith.constant 0 : i32
    %c0_i32_0 = arith.constant 0 : i32
    %c0_i32_1 = arith.constant 0 : i32
    return %c0_i32, %c0_i32_0 : i32, i32
  }
  func.func @transform_3(%arg0: i32) -> (i32, i32) {
    %c0_i32 = arith.constant 0 : i32
    %c0_i32_0 = arith.constant 0 : i32
    return %arg0, %c0_i32 : i32, i32
  }
}

</mosaic_0001>

<llo_original>
// kernel: _lambda_.1
$region0: #{_lambda_.1}
  #allocation0 [shape = 'u32[]', space=smem, size = 0x4, offset = 0x4, fixed_abs, tag = 'smem constant byte address 0x4 - core index']
  #allocation1 [shape = 'u32[144,128]{1,0:T(1,128)}', space=vmem, size = 0x12000, scoped, tag = 'internal scratch']
  %s0 = inlined_call_operand.vmem [shape: f32[256,16], index: 0, kind: input, shape index: {}]
  %s1 = inlined_call_operand.vmem [shape: f32[256,4], index: 1, kind: input, shape index: {}]
  %s2 = inlined_call_operand.vmem [shape: f32[192,64], index: 2, kind: input, shape index: {}]
  %s3 = inlined_call_operand.vmem [shape: f32[256,1], index: 3, kind: output, shape index: {}]
  %s4 = sld [smem:[#allocation0]]
  $region45: #{_lambda_.1} parent=0
    _
  %s6 = ssub.s32 1, %s4
  %s7 = scalar_select 0, %s6, %s4
  loop: start=0, step=1, limit=4
  $region2: #{_lambda_.1} parent=0 // loop_pre_header
    _
  $region3: #{_lambda_.1} parent=0 // loop_header
    %s9 = sphi 0, %s13
    %p10 = scmp.ge.s32.totalorder %s9, 4
    %s19 = sphi 0, %s21
    %s22 = sphi 0, %s19
    %s23 = sphi 0, %s22
    %s39 = sphi 0, %s23
    %s45 = sphi 0, %s47
    %s48 = sphi 0, %s45
    %s49 = sphi 0, %s48
    %s65 = sphi 0, %s49
    %s69 = sphi 0, %s69
    %s71 = sphi 0, %s69
    %s72 = sphi 0, %s71
    %s86 = sphi 0, %s72
    %s92 = sphi 0, %s94
    %s95 = sphi 0, %s92
    %s96 = sphi 0, %s95
    %s112 = sphi 0, %s96
  $region4: #{_lambda_.1} parent=0 // loop_header_branch
    %12 = sbr.rel (%p10) target = $region8
  $region5: #{_lambda_.1} parent=0 // loop_body
    %s14 = ssub.s32 %s9, 1
    %s15 = ssub.s32 %s9, 2
    %s16 = sadd.s32 %s9, 1
    %s17 = ssub.s32 %s9, %s16
    %p18 = scmp.eq.s32.totalorder %s17, 0
    %s20 = sadd.s32 %s19, 1
    %s21 = scalar_select %p18, %s19, %s20
    %p24 = pneg %p18
    %p25 = scmp.eq.s32.totalorder %s9, 1
    %p26 = por %p24, %p25
    %p27 = scmp.ne.s32.totalorder %s19, %s22
    %p28 = scmp.eq.s32.totalorder %s9, 0
    %p29 = por %p27, %p28
    %p30 = scmp.ne.s32.totalorder %s19, %s22
    %p31 = scmp.eq.s32.totalorder %s14, 1
    %p32 = por %p30, %p31
    %p33 = scmp.ne.s32.totalorder %s22, %s23
    %p34 = scmp.eq.s32.totalorder %s14, 0
    %p35 = por %p33, %p34
    %p36 = scmp.ne.s32.totalorder %s22, %s23
    %p37 = scmp.eq.s32.totalorder %s15, 1
    %p38 = por %p36, %p37
    %p40 = scmp.ne.s32.totalorder %s23, %s39
    %p41 = scmp.eq.s32.totalorder %s15, 0
    %p42 = por %p40, %p41
    %s43 = ssub.s32 %s9, %s16
    %p44 = scmp.eq.s32.totalorder %s43, 0
    %s46 = sadd.s32 %s45, 1
    %s47 = scalar_select %p44, %s45, %s46
    %p50 = pneg %p44
    %p51 = scmp.eq.s32.totalorder %s9, 1
    %p52 = por %p50, %p51
    %p53 = scmp.ne.s32.totalorder %s45, %s48
    %p54 = scmp.eq.s32.totalorder %s9, 0
    %p55 = por %p53, %p54
    %p56 = scmp.ne.s32.totalorder %s45, %s48
    %p57 = scmp.eq.s32.totalorder %s14, 1
    %p58 = por %p56, %p57
    %p59 = scmp.ne.s32.totalorder %s48, %s49
    %p60 = scmp.eq.s32.totalorder %s14, 0
    %p61 = por %p59, %p60
    %p62 = scmp.ne.s32.totalorder %s48, %s49
    %p63 = scmp.eq.s32.totalorder %s15, 1
    %p64 = por %p62, %p63
    %p66 = scmp.ne.s32.totalorder %s49, %s65
    %p67 = scmp.eq.s32.totalorder %s15, 0
    %p68 = por %p66, %p67
    %s70 = sadd.s32 %s69, 1
    %p73 = scmp.eq.s32.totalorder %s9, 1
    %p74 = scmp.ne.s32.totalorder %s69, %s71
    %p75 = scmp.eq.s32.totalorder %s9, 0
    %p76 = por %p74, %p75
    %p77 = scmp.ne.s32.totalorder %s69, %s71
    %p78 = scmp.eq.s32.totalorder %s14, 1
    %p79 = por %p77, %p78
    %p80 = scmp.ne.s32.totalorder %s71, %s72
    %p81 = scmp.eq.s32.totalorder %s14, 0
    %p82 = por %p80, %p81
    %p83 = scmp.ne.s32.totalorder %s71, %s72
    %p84 = scmp.eq.s32.totalorder %s15, 1
    %p85 = por %p83, %p84
    %p87 = scmp.ne.s32.totalorder %s72, %s86
    %p88 = scmp.eq.s32.totalorder %s15, 0
    %p89 = por %p87, %p88
    %s90 = ssub.s32 %s9, %s16
    %p91 = scmp.eq.s32.totalorder %s90, 0
    %s93 = sadd.s32 %s92, 1
    %s94 = scalar_select %p91, %s92, %s93
    %p97 = pneg %p91
    %p98 = scmp.eq.s32.totalorder %s9, 1
    %p99 = por %p97, %p98
    %p100 = scmp.ne.s32.totalorder %s92, %s95
    %p101 = scmp.eq.s32.totalorder %s9, 0
    %p102 = por %p100, %p101
    %p103 = scmp.ne.s32.totalorder %s92, %s95
    %p104 = scmp.eq.s32.totalorder %s14, 1
    %p105 = por %p103, %p104
    %p106 = scmp.ne.s32.totalorder %s95, %s96
    %p107 = scmp.eq.s32.totalorder %s14, 0
    %p108 = por %p106, %p107
    %p109 = scmp.ne.s32.totalorder %s95, %s96
    %p110 = scmp.eq.s32.totalorder %s15, 1
    %p111 = por %p109, %p110
    %p113 = scmp.ne.s32.totalorder %s96, %s112
    %p114 = scmp.eq.s32.totalorder %s15, 0
    %p115 = por %p113, %p114
    %p116 = scmp.le.s32.totalorder 1, %s9
    %p117 = scmp.lt.s32.totalorder %s9, 3
    %p118 = pnand %p116, %p117
    %p119 = pneg %p118
    // Predicated region
    $region9: #{_lambda_.1} parent=5 // pred_check
      _
    $region10: #{_lambda_.1} parent=5 // pred_check_branch
      %121 = sbr.rel (%p118) target = $region12
    $region11: #{_lambda_.1} parent=5 // pred_region
      %s122 = ssub.s32 %s9, 1
      // Predicated region
      $region13: #{_lambda_.1} parent=11 // pred_check
        %p123 = pneg %p82
      $region14: #{_lambda_.1} parent=11 // pred_check_branch
        %125 = sbr.rel (%p123) target = $region16
      $region15: #{_lambda_.1} parent=11 // pred_region
        _
      $region16: #{_lambda_.1} parent=11 // pred_fallthru
        _
    $region12: #{_lambda_.1} parent=5 // pred_fallthru
      _
    %p126 = scmp.lt.s32.totalorder %s9, 2
    // Predicated region
    $region17: #{_lambda_.1} parent=5 // pred_check
      %p127 = pneg %p126
    $region18: #{_lambda_.1} parent=5 // pred_check_branch
      %129 = sbr.rel (%p127) target = $region20
    $region19: #{_lambda_.1} parent=5 // pred_region
      // Predicated region
      $region21: #{_lambda_.1} parent=19 // pred_check
        %p130 = pneg %p29
      $region22: #{_lambda_.1} parent=19 // pred_check_branch
        %132 = sbr.rel (%p130) target = $region24
      $region23: #{_lambda_.1} parent=19 // pred_region
        %s133 = smul.u32 16, %s9
        %p134 = scmp.lt.s32.totalorder %s133, 31
        %s135 = scalar_select %p134, %s133, 31
        %s136 = smul.addr %s135, 8
        %s137 = scalar_lea.vmem %s0, %s136
        %s138 = smul.u32 16, %s9
      $region24: #{_lambda_.1} parent=19 // pred_fallthru
        _
      // Predicated region
      $region25: #{_lambda_.1} parent=19 // pred_check
        %p139 = pneg %p55
      $region26: #{_lambda_.1} parent=19 // pred_check_branch
        %141 = sbr.rel (%p139) target = $region28
      $region27: #{_lambda_.1} parent=19 // pred_region
        %s142 = smul.u32 16, %s9
        %p143 = scmp.lt.s32.totalorder %s142, 31
        %s144 = scalar_select %p143, %s142, 31
        %s145 = smul.addr %s144, 8
        %s146 = scalar_lea.vmem %s1, %s145
        %s147 = smul.u32 16, %s9
      $region28: #{_lambda_.1} parent=19 // pred_fallthru
        _
    $region20: #{_lambda_.1} parent=5 // pred_fallthru
      _
    %p148 = scmp.le.s32.totalorder 1, %s9
    %p149 = scmp.lt.s32.totalorder %s9, 3
    %p150 = pnand %p148, %p149
    %p151 = pneg %p150
    // Predicated region
    $region29: #{_lambda_.1} parent=5 // pred_check
      _
    $region30: #{_lambda_.1} parent=5 // pred_check_branch
      %153 = sbr.rel (%p150) target = $region32
    $region31: #{_lambda_.1} parent=5 // pred_region
      %s154 = ssub.s32 %s9, 1
      %s155 = smul.u32 16, %s14
      %p156 = scmp.lt.s32.totalorder %s155, 31
      %s157 = scalar_select %p156, %s155, 31
      %s158 = smul.addr %s157, 8
      %s159 = scalar_lea.vmem %s0, %s158
      %p160 = pneg %p35
      %p161 = pneg %p32
      %s162 = smul.u32 16, %s14
      %p163 = scmp.lt.s32.totalorder %s162, 31
      %s164 = scalar_select %p163, %s162, 31
      %s165 = smul.addr %s164, 8
      %s166 = scalar_lea.vmem %s1, %s165
      %p167 = pneg %p61
      %p168 = pneg %p58
      %p169 = pneg %p82
      %p170 = pneg %p79
      %p171 = pneg %p108
      %p172 = pneg %p105
      %s173 = smul.u32 16, %s14
      %p174 = scmp.lt.s32.totalorder %s173, 31
      %s175 = scalar_select %p174, %s173, 31
      %s176 = smul.addr %s175, 8
      %s177 = scalar_lea.vmem %s3, %s176
      %s178 = smul.u32 16, %s14
      %p179 = scmp.lt.s32.totalorder %s178, 31
      %s180 = scalar_select %p179, %s178, 31
      %s181 = smul.addr %s180, 8
      %s182 = scalar_lea.vmem %s0, %s181
      %s183 = smul.u32 16, %s14
      %s184 = smul.u32 16, %s14
      %p185 = scmp.lt.s32.totalorder %s184, 31
      %s186 = scalar_select %p185, %s184, 31
      %s187 = smul.addr %s186, 8
      %s188 = scalar_lea.vmem %s1, %s187
      %s189 = smul.u32 16, %s14
      %s190 = smul.u32 16, %s14
      %p191 = scmp.lt.s32.totalorder %s190, 31
      %s192 = scalar_select %p191, %s190, 31
      %s193 = smul.addr %s192, 8
      %s194 = scalar_lea.vmem %s3, %s193
      %s195 = smul.u32 16, %s14
      %v196 = vld [vmem:[%s182] sm:$0xff]
      %v197 = vld [vmem:[%s182 + $0x8] sm:$0xff]
      %v198 = vld [vmem:[%s182 + $0x10] sm:$0xff]
      %v199 = vld [vmem:[%s182 + $0x18] sm:$0xff]
      %v200 = vld [vmem:[%s182 + $0x20] sm:$0xff]
      %v201 = vld [vmem:[%s182 + $0x28] sm:$0xff]
      %v202 = vld [vmem:[%s182 + $0x30] sm:$0xff]
      %v203 = vld [vmem:[%s182 + $0x38] sm:$0xff]
      %v204 = vld [vmem:[%s182 + $0x40] sm:$0xff]
      %v205 = vld [vmem:[%s182 + $0x48] sm:$0xff]
      %v206 = vld [vmem:[%s182 + $0x50] sm:$0xff]
      %v207 = vld [vmem:[%s182 + $0x58] sm:$0xff]
      %v208 = vld [vmem:[%s182 + $0x60] sm:$0xff]
      %v209 = vld [vmem:[%s182 + $0x68] sm:$0xff]
      %v210 = vld [vmem:[%s182 + $0x70] sm:$0xff]
      %v211 = vld [vmem:[%s182 + $0x78] sm:$0xff]
      %v212 = vld [vmem:[%s188] sm:$0xff]
      %v213 = vld [vmem:[%s188 + $0x8] sm:$0xff]
      %v214 = vld [vmem:[%s188 + $0x10] sm:$0xff]
      %v215 = vld [vmem:[%s188 + $0x18] sm:$0xff]
      %v216 = vld [vmem:[%s188 + $0x20] sm:$0xff]
      %v217 = vld [vmem:[%s188 + $0x28] sm:$0xff]
      %v218 = vld [vmem:[%s188 + $0x30] sm:$0xff]
      %v219 = vld [vmem:[%s188 + $0x38] sm:$0xff]
      %v220 = vld [vmem:[%s188 + $0x40] sm:$0xff]
      %v221 = vld [vmem:[%s188 + $0x48] sm:$0xff]
      %v222 = vld [vmem:[%s188 + $0x50] sm:$0xff]
      %v223 = vld [vmem:[%s188 + $0x58] sm:$0xff]
      %v224 = vld [vmem:[%s188 + $0x60] sm:$0xff]
      %v225 = vld [vmem:[%s188 + $0x68] sm:$0xff]
      %v226 = vld [vmem:[%s188 + $0x70] sm:$0xff]
      %v227 = vld [vmem:[%s188 + $0x78] sm:$0xff]
      %v228 = vld [vmem:[%s2] sm:$0xff]
      %v229 = vld [vmem:[%s2 + $0x8] sm:$0xff]
      %v230 = vld [vmem:[%s2 + $0x10] sm:$0xff]
      %v231 = vld [vmem:[%s2 + $0x18] sm:$0xff]
      %v232 = vld [vmem:[%s2 + $0x20] sm:$0xff]
      %v233 = vld [vmem:[%s2 + $0x28] sm:$0xff]
      %v234 = vld [vmem:[%s2 + $0x30] sm:$0xff]
      %v235 = vld [vmem:[%s2 + $0x38] sm:$0xff]
      %v236 = vld [vmem:[%s2 + $0x40] sm:$0xff]
      %v237 = vld [vmem:[%s2 + $0x48] sm:$0xff]
      %v238 = vld [vmem:[%s2 + $0x50] sm:$0xf]
      %v239 = vld [vmem:[%s2 + $0x58] sm:$0xff]
      %v240 = vld [vmem:[%s2 + $0x60] sm:$0xff]
      %v241 = vld [vmem:[%s2 + $0x68] sm:$0xff]
      %v242 = vld [vmem:[%s2 + $0x70] sm:$0xff]
      %v243 = vld [vmem:[%s2 + $0x78] sm:$0xff]
      %v244 = vld [vmem:[%s2 + $0x80] sm:$0xff]
      %v245 = vld [vmem:[%s2 + $0x88] sm:$0xff]
      %v246 = vld [vmem:[%s2 + $0x90] sm:$0xff]
      %v247 = vld [vmem:[%s2 + $0x98] sm:$0x1]
      %v248 = vld [vmem:[%s2 + $0xa0] sm:$0x1]
      %v249 = vld [vmem:[%s2 + $0xa8] sm:$0x1]
      %v250 = vld [vmem:[%s2 + $0xb0] sm:$0x1]
      %v251 = vld [vmem:[%s2 + $0xb8] sm:$0x1]
      %v252 = vlaneseq
      %v253 = vshrl.u32 %v252, 7
      %v254 = vsub.s32 0, %v253
      %v255 = vrot.slane %v247, %v254
      %vm256 = vcmask 130048
      %v258 = vsel %vm256, %v196, 0
      %v261 = vsel %vm256, %v197, 0
      %v264 = vsel %vm256, %v198, 0
      %v267 = vsel %vm256, %v199, 0
      %v270 = vsel %vm256, %v200, 0
      %v273 = vsel %vm256, %v201, 0
      %v276 = vsel %vm256, %v202, 0
      %v279 = vsel %vm256, %v203, 0
      %v282 = vsel %vm256, %v204, 0
      %v285 = vsel %vm256, %v205, 0
      %v288 = vsel %vm256, %v206, 0
      %v291 = vsel %vm256, %v207, 0
      %v294 = vsel %vm256, %v208, 0
      %v297 = vsel %vm256, %v209, 0
      %v300 = vsel %vm256, %v210, 0
      %v303 = vsel %vm256, %v211, 0
      %305 = vmatprep.subr.mxu0 0.0
      %306 = vmatpush1.msra.mxu0 %v228
      %307 = vmatprep.subr.mxu0 0.0
      %308 = vmatpush1.msra.mxu0 %v229
      %309 = vmatprep.subr.mxu0 0.0
      %310 = vmatpush1.msra.mxu0 0.0
      %311 = vmatprep.subr.mxu0 0.0
      %312 = vmatpush1.msra.mxu0 0.0
      %313 = vmatprep.subr.mxu0 0.0
      %314 = vmatpush1.msra.mxu0 0.0
      %315 = vmatprep.subr.mxu0 0.0
      %316 = vmatpush1.msra.mxu0 0.0
      %317 = vmatprep.subr.mxu0 0.0
      %318 = vmatpush1.msra.mxu0 0.0
      %319 = vmatprep.subr.mxu0 0.0
      %320 = vmatpush1.msra.mxu0 0.0
      %321 = vmatprep.subr.mxu0 0.0
      %322 = vmatpush1.msra.mxu0 0.0
      %323 = vmatprep.subr.mxu0 0.0
      %324 = vmatpush1.msra.mxu0 0.0
      %325 = vmatprep.subr.mxu0 0.0
      %326 = vmatpush1.msra.mxu0 0.0
      %327 = vmatprep.subr.mxu0 0.0
      %328 = vmatpush1.msra.mxu0 0.0
      %329 = vmatprep.subr.mxu0 0.0
      %330 = vmatpush1.msra.mxu0 0.0
      %331 = vmatprep.subr.mxu0 0.0
      %332 = vmatpush1.msra.mxu0 0.0
      %333 = vmatprep.subr.mxu0 0.0
      %334 = vmatpush1.msra.mxu0 0.0
      %335 = vmatprep.subr.mxu0 0.0
      %336 = vmatpush1.msra.mxu0 0.0
      %337 = vmatprep.subr.mxu0 0.0
      %338 = vmatpush1.msra.mxu0 0.0
      %339 = vmatprep.subr.mxu0 0.0
      %340 = vmatpush1.msra.mxu0 0.0
      %341 = vmatprep.subr.mxu0 0.0
      %342 = vmatpush1.msra.mxu0 0.0
      %343 = vmatprep.subr.mxu0 0.0
      %344 = vmatpush1.msra.mxu0 0.0
      %345 = vmatprep.subr.mxu0 0.0
      %346 = vmatpush1.msra.mxu0 0.0
      %347 = vmatprep.subr.mxu0 0.0
      %348 = vmatpush1.msra.mxu0 0.0
      %349 = vmatprep.subr.mxu0 0.0
      %350 = vmatpush1.msra.mxu0 0.0
      %351 = vmatprep.subr.mxu0 0.0
      %352 = vmatpush1.msra.mxu0 0.0
      %353 = vmatprep.subr.mxu0 0.0
      %354 = vmatpush1.msra.mxu0 0.0
      %355 = vmatprep.subr.mxu0 0.0
      %356 = vmatpush1.msra.mxu0 0.0
      %357 = vmatprep.subr.mxu0 0.0
      %358 = vmatpush1.msra.mxu0 0.0
      %359 = vmatprep.subr.mxu0 0.0
      %360 = vmatpush1.msra.mxu0 0.0
      %361 = vmatprep.subr.mxu0 0.0
      %362 = vmatpush1.msra.mxu0 0.0
      %363 = vmatprep.subr.mxu0 0.0
      %364 = vmatpush1.msra.mxu0 0.0
      %365 = vmatprep.subr.mxu0 0.0
      %366 = vmatpush1.msra.mxu0 0.0
      %367 = vmatprep.subr.mxu0 0.0
      %368 = vmatpush1.msra.mxu0 0.0
      %369 = vmatprep.mubr.f32.mxu0 0.0
      %370 = vmatmul.mubr.f32.gmra.mrb[0].mxu0 %v258
      %v371 = vpop.f32.mrb[0].mxu0
      %v372 = vadd.f32 %v255, %v371
      %v373 = vpop.f32.mrb[0].mxu0
      %374 = vmatprep.mubr.f32.mxu0 0.0
      %375 = vmatmul.mubr.f32.gmra.mrb[0].mxu0 %v261
      %v376 = vpop.f32.mrb[0].mxu0
      %v377 = vadd.f32 %v255, %v376
      %v378 = vpop.f32.mrb[0].mxu0
      %379 = vmatprep.mubr.f32.mxu0 0.0
      %380 = vmatmul.mubr.f32.gmra.mrb[0].mxu0 %v264
      %v381 = vpop.f32.mrb[0].mxu0
      %v382 = vadd.f32 %v255, %v381
      %v383 = vpop.f32.mrb[0].mxu0
      %384 = vmatprep.mubr.f32.mxu0 0.0
      %385 = vmatmul.mubr.f32.gmra.mrb[0].mxu0 %v267
      %v386 = vpop.f32.mrb[0].mxu0
      %v387 = vadd.f32 %v255, %v386
      %v388 = vpop.f32.mrb[0].mxu0
      %389 = vmatprep.mubr.f32.mxu0 0.0
      %390 = vmatmul.mubr.f32.gmra.mrb[0].mxu0 %v270
      %v391 = vpop.f32.mrb[0].mxu0
      %v392 = vadd.f32 %v255, %v391
      %v393 = vpop.f32.mrb[0].mxu0
      %394 = vmatprep.mubr.f32.mxu0 0.0
      %395 = vmatmul.mubr.f32.gmra.mrb[0].mxu0 %v273
      %v396 = vpop.f32.mrb[0].mxu0
      %v397 = vadd.f32 %v255, %v396
      %v398 = vpop.f32.mrb[0].mxu0
      %399 = vmatprep.mubr.f32.mxu0 0.0
      %400 = vmatmul.mubr.f32.gmra.mrb[0].mxu0 %v276
      %v401 = vpop.f32.mrb[0].mxu0
      %v402 = vadd.f32 %v255, %v401
      %v403 = vpop.f32.mrb[0].mxu0
      %404 = vmatprep.mubr.f32.mxu0 0.0
      %405 = vmatmul.mubr.f32.gmra.mrb[0].mxu0 %v279
      %v406 = vpop.f32.mrb[0].mxu0
      %v407 = vadd.f32 %v255, %v406
      %v408 = vpop.f32.mrb[0].mxu0
      %409 = vmatprep.mubr.f32.mxu0 0.0
      %410 = vmatmul.mubr.f32.gmra.mrb[0].mxu0 %v282
      %v411 = vpop.f32.mrb[0].mxu0
      %v412 = vadd.f32 %v255, %v411
      %v413 = vpop.f32.mrb[0].mxu0
      %414 = vmatprep.mubr.f32.mxu0 0.0
      %415 = vmatmul.mubr.f32.gmra.mrb[0].mxu0 %v285
      %v416 = vpop.f32.mrb[0].mxu0
      %v417 = vadd.f32 %v255, %v416
      %v418 = vpop.f32.mrb[0].mxu0
      %419 = vmatprep.mubr.f32.mxu0 0.0
      %420 = vmatmul.mubr.f32.gmra.mrb[0].mxu0 %v288
      %v421 = vpop.f32.mrb[0].mxu0
      %v422 = vadd.f32 %v255, %v421
      %v423 = vpop.f32.mrb[0].mxu0
      %424 = vmatprep.mubr.f32.mxu0 0.0
      %425 = vmatmul.mubr.f32.gmra.mrb[0].mxu0 %v291
      %v426 = vpop.f32.mrb[0].mxu0
      %v427 = vadd.f32 %v255, %v426
      %v428 = vpop.f32.mrb[0].mxu0
      %429 = vmatprep.mubr.f32.mxu0 0.0
      %430 = vmatmul.mubr.f32.gmra.mrb[0].mxu0 %v294
      %v431 = vpop.f32.mrb[0].mxu0
      %v432 = vadd.f32 %v255, %v431
      %v433 = vpop.f32.mrb[0].mxu0
      %434 = vmatprep.mubr.f32.mxu0 0.0
      %435 = vmatmul.mubr.f32.gmra.mrb[0].mxu0 %v297
      %v436 = vpop.f32.mrb[0].mxu0
      %v437 = vadd.f32 %v255, %v436
      %v438 = vpop.f32.mrb[0].mxu0
      %439 = vmatprep.mubr.f32.mxu0 0.0
      %440 = vmatmul.mubr.f32.gmra.mrb[0].mxu0 %v300
      %v441 = vpop.f32.mrb[0].mxu0
      %v442 = vadd.f32 %v255, %v441
      %v443 = vpop.f32.mrb[0].mxu0
      %444 = vmatprep.mubr.f32.mxu0 0.0
      %445 = vmatmul.mubr.f32.gmra.mrb[0].mxu0 %v303
      %v446 = vpop.f32.mrb[0].mxu0
      %v447 = vadd.f32 %v255, %v446
      %v448 = vpop.f32.mrb[0].mxu0
      %449 = vdwg.mxu0
      %v450 = vmax.f32 %v372, 0.0
      %v451 = vmax.f32 %v377, 0.0
      %v452 = vmax.f32 %v382, 0.0
      %v453 = vmax.f32 %v387, 0.0
      %v454 = vmax.f32 %v392, 0.0
      %v455 = vmax.f32 %v397, 0.0
      %v456 = vmax.f32 %v402, 0.0
      %v457 = vmax.f32 %v407, 0.0
      %v458 = vmax.f32 %v412, 0.0
      %v459 = vmax.f32 %v417, 0.0
      %v460 = vmax.f32 %v422, 0.0
      %v461 = vmax.f32 %v427, 0.0
      %v462 = vmax.f32 %v432, 0.0
      %v463 = vmax.f32 %v437, 0.0
      %v464 = vmax.f32 %v442, 0.0
      %v465 = vmax.f32 %v447, 0.0
      %vm466 = vcmask 31744
      %v468 = vsel %vm466, %v212, 0
      %v471 = vsel %vm466, %v213, 0
      %v474 = vsel %vm466, %v214, 0
      %v477 = vsel %vm466, %v215, 0
      %v480 = vsel %vm466, %v216, 0
      %v483 = vsel %vm466, %v217, 0
      %v486 = vsel %vm466, %v218, 0
      %v489 = vsel %vm466, %v219, 0
      %v492 = vsel %vm466, %v220, 0
      %v495 = vsel %vm466, %v221, 0
      %v498 = vsel %vm466, %v222, 0
      %v501 = vsel %vm466, %v223, 0
      %v504 = vsel %vm466, %v224, 0
      %v507 = vsel %vm466, %v225, 0
      %v510 = vsel %vm466, %v226, 0
      %v513 = vsel %vm466, %v227, 0
      %vm515 = vcmask 1043456
      %v517 = vsel %vm515, %v238, 0
      %519 = vmatprep.subr.mxu0 0.0
      %520 = vmatpush1.msra.mxu0 %v517
      %521 = vmatprep.subr.mxu0 0.0
      %522 = vmatpush1.msra.mxu0 0.0
      %523 = vmatprep.subr.mxu0 0.0
      %524 = vmatpush1.msra.mxu0 0.0
      %525 = vmatprep.subr.mxu0 0.0
      %526 = vmatpush1.msra.mxu0 0.0
      %527 = vmatprep.subr.mxu0 0.0
      %528 = vmatpush1.msra.mxu0 0.0
      %529 = vmatprep.subr.mxu0 0.0
      %530 = vmatpush1.msra.mxu0 0.0
      %531 = vmatprep.subr.mxu0 0.0
      %532 = vmatpush1.msra.mxu0 0.0
      %533 = vmatprep.subr.mxu0 0.0
      %534 = vmatpush1.msra.mxu0 0.0
      %535 = vmatprep.subr.mxu0 0.0
      %536 = vmatpush1.msra.mxu0 0.0
      %537 = vmatprep.subr.mxu0 0.0
      %538 = vmatpush1.msra.mxu0 0.0
      %539 = vmatprep.subr.mxu0 0.0
      %540 = vmatpush1.msra.mxu0 0.0
      %541 = vmatprep.subr.mxu0 0.0
      %542 = vmatpush1.msra.mxu0 0.0
      %543 = vmatprep.subr.mxu0 0.0
      %544 = vmatpush1.msra.mxu0 0.0
      %545 = vmatprep.subr.mxu0 0.0
      %546 = vmatpush1.msra.mxu0 0.0
      %547 = vmatprep.subr.mxu0 0.0
      %548 = vmatpush1.msra.mxu0 0.0
      %549 = vmatprep.subr.mxu0 0.0
      %550 = vmatpush1.msra.mxu0 0.0
      %551 = vmatprep.subr.mxu0 0.0
      %552 = vmatpush1.msra.mxu0 0.0
      %553 = vmatprep.subr.mxu0 0.0
      %554 = vmatpush1.msra.mxu0 0.0
      %555 = vmatprep.subr.mxu0 0.0
      %556 = vmatpush1.msra.mxu0 0.0
      %557 = vmatprep.subr.mxu0 0.0
      %558 = vmatpush1.msra.mxu0 0.0
      %559 = vmatprep.subr.mxu0 0.0
      %560 = vmatpush1.msra.mxu0 0.0
      %561 = vmatprep.subr.mxu0 0.0
      %562 = vmatpush1.msra.mxu0 0.0
      %563 = vmatprep.subr.mxu0 0.0
      %564 = vmatpush1.msra.mxu0 0.0
      %565 = vmatprep.subr.mxu0 0.0
      %566 = vmatpush1.msra.mxu0 0.0
      %567 = vmatprep.subr.mxu0 0.0
      %568 = vmatpush1.msra.mxu0 0.0
      %569 = vmatprep.subr.mxu0 0.0
      %570 = vmatpush1.msra.mxu0 0.0
      %571 = vmatprep.subr.mxu0 0.0
      %572 = vmatpush1.msra.mxu0 0.0
      %573 = vmatprep.subr.mxu0 0.0
      %574 = vmatpush1.msra.mxu0 0.0
      %575 = vmatprep.subr.mxu0 0.0
      %576 = vmatpush1.msra.mxu0 0.0
      %577 = vmatprep.subr.mxu0 0.0
      %578 = vmatpush1.msra.mxu0 0.0
      %579 = vmatprep.subr.mxu0 0.0
      %580 = vmatpush1.msra.mxu0 0.0
      %581 = vmatprep.subr.mxu0 0.0
      %582 = vmatpush1.msra.mxu0 0.0
      %583 = vmatprep.mubr.f32.mxu0 0.0
      %584 = vmatmul.mubr.f32.gmra.mrb[0].mxu0 %v468
      %v585 = vpop.f32.mrb[0].mxu0
      %v586 = vadd.f32 0.0, %v585
      %v587 = vpop.f32.mrb[0].mxu0
      %588 = vmatprep.mubr.f32.mxu0 0.0
      %589 = vmatmul.mubr.f32.gmra.mrb[0].mxu0 %v471
      %v590 = vpop.f32.mrb[0].mxu0
      %v591 = vadd.f32 0.0, %v590
      %v592 = vpop.f32.mrb[0].mxu0
      %593 = vmatprep.mubr.f32.mxu0 0.0
      %594 = vmatmul.mubr.f32.gmra.mrb[0].mxu0 %v474
      %v595 = vpop.f32.mrb[0].mxu0
      %v596 = vadd.f32 0.0, %v595
      %v597 = vpop.f32.mrb[0].mxu0
      %598 = vmatprep.mubr.f32.mxu0 0.0
      %599 = vmatmul.mubr.f32.gmra.mrb[0].mxu0 %v477
      %v600 = vpop.f32.mrb[0].mxu0
      %v601 = vadd.f32 0.0, %v600
      %v602 = vpop.f32.mrb[0].mxu0
      %603 = vmatprep.mubr.f32.mxu0 0.0
      %604 = vmatmul.mubr.f32.gmra.mrb[0].mxu0 %v480
      %v605 = vpop.f32.mrb[0].mxu0
      %v606 = vadd.f32 0.0, %v605
      %v607 = vpop.f32.mrb[0].mxu0
      %608 = vmatprep.mubr.f32.mxu0 0.0
      %609 = vmatmul.mubr.f32.gmra.mrb[0].mxu0 %v483
      %v610 = vpop.f32.mrb[0].mxu0
      %v611 = vadd.f32 0.0, %v610
      %v612 = vpop.f32.mrb[0].mxu0
      %613 = vmatprep.mubr.f32.mxu0 0.0
      %614 = vmatmul.mubr.f32.gmra.mrb[0].mxu0 %v486
      %v615 = vpop.f32.mrb[0].mxu0
      %v616 = vadd.f32 0.0, %v615
      %v617 = vpop.f32.mrb[0].mxu0
      %618 = vmatprep.mubr.f32.mxu0 0.0
      %619 = vmatmul.mubr.f32.gmra.mrb[0].mxu0 %v489
      %v620 = vpop.f32.mrb[0].mxu0
      %v621 = vadd.f32 0.0, %v620
      %v622 = vpop.f32.mrb[0].mxu0
      %623 = vmatprep.mubr.f32.mxu0 0.0
      %624 = vmatmul.mubr.f32.gmra.mrb[0].mxu0 %v492
      %v625 = vpop.f32.mrb[0].mxu0
      %v626 = vadd.f32 0.0, %v625
      %v627 = vpop.f32.mrb[0].mxu0
      %628 = vmatprep.mubr.f32.mxu0 0.0
      %629 = vmatmul.mubr.f32.gmra.mrb[0].mxu0 %v495
      %v630 = vpop.f32.mrb[0].mxu0
      %v631 = vadd.f32 0.0, %v630
      %v632 = vpop.f32.mrb[0].mxu0
      %633 = vmatprep.mubr.f32.mxu0 0.0
      %634 = vmatmul.mubr.f32.gmra.mrb[0].mxu0 %v498
      %v635 = vpop.f32.mrb[0].mxu0
      %v636 = vadd.f32 0.0, %v635
      %v637 = vpop.f32.mrb[0].mxu0
      %638 = vmatprep.mubr.f32.mxu0 0.0
      %639 = vmatmul.mubr.f32.gmra.mrb[0].mxu0 %v501
      %v640 = vpop.f32.mrb[0].mxu0
      %v641 = vadd.f32 0.0, %v640
      %v642 = vpop.f32.mrb[0].mxu0
      %643 = vmatprep.mubr.f32.mxu0 0.0
      %644 = vmatmul.mubr.f32.gmra.mrb[0].mxu0 %v504
      %v645 = vpop.f32.mrb[0].mxu0
      %v646 = vadd.f32 0.0, %v645
      %v647 = vpop.f32.mrb[0].mxu0
      %648 = vmatprep.mubr.f32.mxu0 0.0
      %649 = vmatmul.mubr.f32.gmra.mrb[0].mxu0 %v507
      %v650 = vpop.f32.mrb[0].mxu0
      %v651 = vadd.f32 0.0, %v650
      %v652 = vpop.f32.mrb[0].mxu0
      %653 = vmatprep.mubr.f32.mxu0 0.0
      %654 = vmatmul.mubr.f32.gmra.mrb[0].mxu0 %v510
      %v655 = vpop.f32.mrb[0].mxu0
      %v656 = vadd.f32 0.0, %v655
      %v657 = vpop.f32.mrb[0].mxu0
      %658 = vmatprep.mubr.f32.mxu0 0.0
      %659 = vmatmul.mubr.f32.gmra.mrb[0].mxu0 %v513
      %v660 = vpop.f32.mrb[0].mxu0
      %v661 = vadd.f32 0.0, %v660
      %v662 = vpop.f32.mrb[0].mxu0
      %663 = vdwg.mxu0
      %vm664 = vcmask 523264
      %v666 = vsel %vm664, %v450, 0
      %v669 = vsel %vm664, %v451, 0
      %v672 = vsel %vm664, %v452, 0
      %v675 = vsel %vm664, %v453, 0
      %v678 = vsel %vm664, %v454, 0
      %v681 = vsel %vm664, %v455, 0
      %v684 = vsel %vm664, %v456, 0
      %v687 = vsel %vm664, %v457, 0
      %v690 = vsel %vm664, %v458, 0
      %v693 = vsel %vm664, %v459, 0
      %v696 = vsel %vm664, %v460, 0
      %v699 = vsel %vm664, %v461, 0
      %v702 = vsel %vm664, %v462, 0
      %v705 = vsel %vm664, %v463, 0
      %v708 = vsel %vm664, %v464, 0
      %v711 = vsel %vm664, %v465, 0
      %713 = vmatprep.subr.mxu0 0.0
      %714 = vmatpush1.msra.mxu0 %v230
      %715 = vmatprep.subr.mxu0 0.0
      %716 = vmatpush1.msra.mxu0 %v231
      %717 = vmatprep.subr.mxu0 0.0
      %718 = vmatpush1.msra.mxu0 %v232
      %719 = vmatprep.subr.mxu0 0.0
      %720 = vmatpush1.msra.mxu0 %v233
      %721 = vmatprep.subr.mxu0 0.0
      %722 = vmatpush1.msra.mxu0 %v234
      %723 = vmatprep.subr.mxu0 0.0
      %724 = vmatpush1.msra.mxu0 %v235
      %725 = vmatprep.subr.mxu0 0.0
      %726 = vmatpush1.msra.mxu0 %v236
      %727 = vmatprep.subr.mxu0 0.0
      %728 = vmatpush1.msra.mxu0 %v237
      %729 = vmatprep.subr.mxu0 0.0
      %730 = vmatpush1.msra.mxu0 0.0
      %731 = vmatprep.subr.mxu0 0.0
      %732 = vmatpush1.msra.mxu0 0.0
      %733 = vmatprep.subr.mxu0 0.0
      %734 = vmatpush1.msra.mxu0 0.0
      %735 = vmatprep.subr.mxu0 0.0
      %736 = vmatpush1.msra.mxu0 0.0
      %737 = vmatprep.subr.mxu0 0.0
      %738 = vmatpush1.msra.mxu0 0.0
      %739 = vmatprep.subr.mxu0 0.0
      %740 = vmatpush1.msra.mxu0 0.0
      %741 = vmatprep.subr.mxu0 0.0
      %742 = vmatpush1.msra.mxu0 0.0
      %743 = vmatprep.subr.mxu0 0.0
      %744 = vmatpush1.msra.mxu0 0.0
      %745 = vmatprep.subr.mxu0 0.0
      %746 = vmatpush1.msra.mxu0 0.0
      %747 = vmatprep.subr.mxu0 0.0
      %748 = vmatpush1.msra.mxu0 0.0
      %749 = vmatprep.subr.mxu0 0.0
      %750 = vmatpush1.msra.mxu0 0.0
      %751 = vmatprep.subr.mxu0 0.0
      %752 = vmatpush1.msra.mxu0 0.0
      %753 = vmatprep.subr.mxu0 0.0
      %754 = vmatpush1.msra.mxu0 0.0
      %755 = vmatprep.subr.mxu0 0.0
      %756 = vmatpush1.msra.mxu0 0.0
      %757 = vmatprep.subr.mxu0 0.0
      %758 = vmatpush1.msra.mxu0 0.0
      %759 = vmatprep.subr.mxu0 0.0
      %760 = vmatpush1.msra.mxu0 0.0
      %761 = vmatprep.subr.mxu0 0.0
      %762 = vmatpush1.msra.mxu0 0.0
      %763 = vmatprep.subr.mxu0 0.0
      %764 = vmatpush1.msra.mxu0 0.0
      %765 = vmatprep.subr.mxu0 0.0
      %766 = vmatpush1.msra.mxu0 0.0
      %767 = vmatprep.subr.mxu0 0.0
      %768 = vmatpush1.msra.mxu0 0.0
      %769 = vmatprep.subr.mxu0 0.0
      %770 = vmatpush1.msra.mxu0 0.0
      %771 = vmatprep.subr.mxu0 0.0
      %772 = vmatpush1.msra.mxu0 0.0
      %773 = vmatprep.subr.mxu0 0.0
      %774 = vmatpush1.msra.mxu0 0.0
      %775 = vmatprep.subr.mxu0 0.0
      %776 = vmatpush1.msra.mxu0 0.0
      %777 = vmatprep.mubr.f32.mxu0 0.0
      %778 = vmatmul.mubr.f32.gmra.mrb[0].mxu0 %v666
      %v779 = vpop.f32.mrb[0].mxu0
      %v780 = vadd.f32 %v586, %v779
      %v781 = vpop.f32.mrb[0].mxu0
      %782 = vmatprep.mubr.f32.mxu0 0.0
      %783 = vmatmul.mubr.f32.gmra.mrb[0].mxu0 %v669
      %v784 = vpop.f32.mrb[0].mxu0
      %v785 = vadd.f32 %v591, %v784
      %v786 = vpop.f32.mrb[0].mxu0
      %787 = vmatprep.mubr.f32.mxu0 0.0
      %788 = vmatmul.mubr.f32.gmra.mrb[0].mxu0 %v672
      %v789 = vpop.f32.mrb[0].mxu0
      %v790 = vadd.f32 %v596, %v789
      %v791 = vpop.f32.mrb[0].mxu0
      %792 = vmatprep.mubr.f32.mxu0 0.0
      %793 = vmatmul.mubr.f32.gmra.mrb[0].mxu0 %v675
      %v794 = vpop.f32.mrb[0].mxu0
      %v795 = vadd.f32 %v601, %v794
      %v796 = vpop.f32.mrb[0].mxu0
      %797 = vmatprep.mubr.f32.mxu0 0.0
      %798 = vmatmul.mubr.f32.gmra.mrb[0].mxu0 %v678
      %v799 = vpop.f32.mrb[0].mxu0
      %v800 = vadd.f32 %v606, %v799
      %v801 = vpop.f32.mrb[0].mxu0
      %802 = vmatprep.mubr.f32.mxu0 0.0
      %803 = vmatmul.mubr.f32.gmra.mrb[0].mxu0 %v681
      %v804 = vpop.f32.mrb[0].mxu0
      %v805 = vadd.f32 %v611, %v804
      %v806 = vpop.f32.mrb[0].mxu0
      %807 = vmatprep.mubr.f32.mxu0 0.0
      %808 = vmatmul.mubr.f32.gmra.mrb[0].mxu0 %v684
      %v809 = vpop.f32.mrb[0].mxu0
      %v810 = vadd.f32 %v616, %v809
      %v811 = vpop.f32.mrb[0].mxu0
      %812 = vmatprep.mubr.f32.mxu0 0.0
      %813 = vmatmul.mubr.f32.gmra.mrb[0].mxu0 %v687
      %v814 = vpop.f32.mrb[0].mxu0
      %v815 = vadd.f32 %v621, %v814
      %v816 = vpop.f32.mrb[0].mxu0
      %817 = vmatprep.mubr.f32.mxu0 0.0
      %818 = vmatmul.mubr.f32.gmra.mrb[0].mxu0 %v690
      %v819 = vpop.f32.mrb[0].mxu0
      %v820 = vadd.f32 %v626, %v819
      %v821 = vpop.f32.mrb[0].mxu0
      %822 = vmatprep.mubr.f32.mxu0 0.0
      %823 = vmatmul.mubr.f32.gmra.mrb[0].mxu0 %v693
      %v824 = vpop.f32.mrb[0].mxu0
      %v825 = vadd.f32 %v631, %v824
      %v826 = vpop.f32.mrb[0].mxu0
      %827 = vmatprep.mubr.f32.mxu0 0.0
      %828 = vmatmul.mubr.f32.gmra.mrb[0].mxu0 %v696
      %v829 = vpop.f32.mrb[0].mxu0
      %v830 = vadd.f32 %v636, %v829
      %v831 = vpop.f32.mrb[0].mxu0
      %832 = vmatprep.mubr.f32.mxu0 0.0
      %833 = vmatmul.mubr.f32.gmra.mrb[0].mxu0 %v699
      %v834 = vpop.f32.mrb[0].mxu0
      %v835 = vadd.f32 %v641, %v834
      %v836 = vpop.f32.mrb[0].mxu0
      %837 = vmatprep.mubr.f32.mxu0 0.0
      %838 = vmatmul.mubr.f32.gmra.mrb[0].mxu0 %v702
      %v839 = vpop.f32.mrb[0].mxu0
      %v840 = vadd.f32 %v646, %v839
      %v841 = vpop.f32.mrb[0].mxu0
      %842 = vmatprep.mubr.f32.mxu0 0.0
      %843 = vmatmul.mubr.f32.gmra.mrb[0].mxu0 %v705
      %v844 = vpop.f32.mrb[0].mxu0
      %v845 = vadd.f32 %v651, %v844
      %v846 = vpop.f32.mrb[0].mxu0
      %847 = vmatprep.mubr.f32.mxu0 0.0
      %848 = vmatmul.mubr.f32.gmra.mrb[0].mxu0 %v708
      %v849 = vpop.f32.mrb[0].mxu0
      %v850 = vadd.f32 %v656, %v849
      %v851 = vpop.f32.mrb[0].mxu0
      %852 = vmatprep.mubr.f32.mxu0 0.0
      %853 = vmatmul.mubr.f32.gmra.mrb[0].mxu0 %v711
      %v854 = vpop.f32.mrb[0].mxu0
      %v855 = vadd.f32 %v661, %v854
      %v856 = vpop.f32.mrb[0].mxu0
      %857 = vdwg.mxu0
      %v858 = vlaneseq
      %v859 = vshrl.u32 %v858, 7
      %v860 = vsub.s32 0, %v859
      %v861 = vrot.slane %v248, %v860
      %v862 = vadd.f32 %v780, %v861
      %v863 = vadd.f32 %v785, %v861
      %v864 = vadd.f32 %v790, %v861
      %v865 = vadd.f32 %v795, %v861
      %v866 = vadd.f32 %v800, %v861
      %v867 = vadd.f32 %v805, %v861
      %v868 = vadd.f32 %v810, %v861
      %v869 = vadd.f32 %v815, %v861
      %v870 = vadd.f32 %v820, %v861
      %v871 = vadd.f32 %v825, %v861
      %v872 = vadd.f32 %v830, %v861
      %v873 = vadd.f32 %v835, %v861
      %v874 = vadd.f32 %v840, %v861
      %v875 = vadd.f32 %v845, %v861
      %v876 = vadd.f32 %v850, %v861
      %v877 = vadd.f32 %v855, %v861
      %v878 = vmax.f32 %v862, 0.0
      %v879 = vmax.f32 %v863, 0.0
      %v880 = vmax.f32 %v864, 0.0
      %v881 = vmax.f32 %v865, 0.0
      %v882 = vmax.f32 %v866, 0.0
      %v883 = vmax.f32 %v867, 0.0
      %v884 = vmax.f32 %v868, 0.0
      %v885 = vmax.f32 %v869, 0.0
      %v886 = vmax.f32 %v870, 0.0
      %v887 = vmax.f32 %v871, 0.0
      %v888 = vmax.f32 %v872, 0.0
      %v889 = vmax.f32 %v873, 0.0
      %v890 = vmax.f32 %v874, 0.0
      %v891 = vmax.f32 %v875, 0.0
      %v892 = vmax.f32 %v876, 0.0
      %v893 = vmax.f32 %v877, 0.0
      %v894 = vlaneseq
      %v895 = vshrl.u32 %v894, 7
      %v896 = vsub.s32 0, %v895
      %v897 = vrot.slane %v249, %v896
      %v899 = vsel %vm664, %v878, 0
      %v902 = vsel %vm664, %v879, 0
      %v905 = vsel %vm664, %v880, 0
      %v908 = vsel %vm664, %v881, 0
      %v911 = vsel %vm664, %v882, 0
      %v914 = vsel %vm664, %v883, 0
      %v917 = vsel %vm664, %v884, 0
      %v920 = vsel %vm664, %v885, 0
      %v923 = vsel %vm664, %v886, 0
      %v926 = vsel %vm664, %v887, 0
      %v929 = vsel %vm664, %v888, 0
      %v932 = vsel %vm664, %v889, 0
      %v935 = vsel %vm664, %v890, 0
      %v938 = vsel %vm664, %v891, 0
      %v941 = vsel %vm664, %v892, 0
      %v944 = vsel %vm664, %v893, 0
      %946 = vmatprep.subr.mxu0 0.0
      %947 = vmatpush1.msra.mxu0 %v239
      %948 = vmatprep.subr.mxu0 0.0
      %949 = vmatpush1.msra.mxu0 %v240
      %950 = vmatprep.subr.mxu0 0.0
      %951 = vmatpush1.msra.mxu0 %v241
      %952 = vmatprep.subr.mxu0 0.0
      %953 = vmatpush1.msra.mxu0 %v242
      %954 = vmatprep.subr.mxu0 0.0
      %955 = vmatpush1.msra.mxu0 %v243
      %956 = vmatprep.subr.mxu0 0.0
      %957 = vmatpush1.msra.mxu0 %v244
      %958 = vmatprep.subr.mxu0 0.0
      %959 = vmatpush1.msra.mxu0 %v245
      %960 = vmatprep.subr.mxu0 0.0
      %961 = vmatpush1.msra.mxu0 %v246
      %962 = vmatprep.subr.mxu0 0.0
      %963 = vmatpush1.msra.mxu0 0.0
      %964 = vmatprep.subr.mxu0 0.0
      %965 = vmatpush1.msra.mxu0 0.0
      %966 = vmatprep.subr.mxu0 0.0
      %967 = vmatpush1.msra.mxu0 0.0
      %968 = vmatprep.subr.mxu0 0.0
      %969 = vmatpush1.msra.mxu0 0.0
      %970 = vmatprep.subr.mxu0 0.0
      %971 = vmatpush1.msra.mxu0 0.0
      %972 = vmatprep.subr.mxu0 0.0
      %973 = vmatpush1.msra.mxu0 0.0
      %974 = vmatprep.subr.mxu0 0.0
      %975 = vmatpush1.msra.mxu0 0.0
      %976 = vmatprep.subr.mxu0 0.0
      %977 = vmatpush1.msra.mxu0 0.0
      %978 = vmatprep.subr.mxu0 0.0
      %979 = vmatpush1.msra.mxu0 0.0
      %980 = vmatprep.subr.mxu0 0.0
      %981 = vmatpush1.msra.mxu0 0.0
      %982 = vmatprep.subr.mxu0 0.0
      %983 = vmatpush1.msra.mxu0 0.0
      %984 = vmatprep.subr.mxu0 0.0
      %985 = vmatpush1.msra.mxu0 0.0
      %986 = vmatprep.subr.mxu0 0.0
      %987 = vmatpush1.msra.mxu0 0.0
      %988 = vmatprep.subr.mxu0 0.0
      %989 = vmatpush1.msra.mxu0 0.0
      %990 = vmatprep.subr.mxu0 0.0
      %991 = vmatpush1.msra.mxu0 0.0
      %992 = vmatprep.subr.mxu0 0.0
      %993 = vmatpush1.msra.mxu0 0.0
      %994 = vmatprep.subr.mxu0 0.0
      %995 = vmatpush1.msra.mxu0 0.0
      %996 = vmatprep.subr.mxu0 0.0
      %997 = vmatpush1.msra.mxu0 0.0
      %998 = vmatprep.subr.mxu0 0.0
      %999 = vmatpush1.msra.mxu0 0.0
      %1000 = vmatprep.subr.mxu0 0.0
      %1001 = vmatpush1.msra.mxu0 0.0
      %1002 = vmatprep.subr.mxu0 0.0
      %1003 = vmatpush1.msra.mxu0 0.0
      %1004 = vmatprep.subr.mxu0 0.0
      %1005 = vmatpush1.msra.mxu0 0.0
      %1006 = vmatprep.subr.mxu0 0.0
      %1007 = vmatpush1.msra.mxu0 0.0
      %1008 = vmatprep.subr.mxu0 0.0
      %1009 = vmatpush1.msra.mxu0 0.0
      %1010 = vmatprep.mubr.f32.mxu0 0.0
      %1011 = vmatmul.mubr.f32.gmra.mrb[0].mxu0 %v899
      %v1012 = vpop.f32.mrb[0].mxu0
      %v1013 = vadd.f32 %v897, %v1012
      %v1014 = vpop.f32.mrb[0].mxu0
      %1015 = vmatprep.mubr.f32.mxu0 0.0
      %1016 = vmatmul.mubr.f32.gmra.mrb[0].mxu0 %v902
      %v1017 = vpop.f32.mrb[0].mxu0
      %v1018 = vadd.f32 %v897, %v1017
      %v1019 = vpop.f32.mrb[0].mxu0
      %1020 = vmatprep.mubr.f32.mxu0 0.0
      %1021 = vmatmul.mubr.f32.gmra.mrb[0].mxu0 %v905
      %v1022 = vpop.f32.mrb[0].mxu0
      %v1023 = vadd.f32 %v897, %v1022
      %v1024 = vpop.f32.mrb[0].mxu0
      %1025 = vmatprep.mubr.f32.mxu0 0.0
      %1026 = vmatmul.mubr.f32.gmra.mrb[0].mxu0 %v908
      %v1027 = vpop.f32.mrb[0].mxu0
      %v1028 = vadd.f32 %v897, %v1027
      %v1029 = vpop.f32.mrb[0].mxu0
      %1030 = vmatprep.mubr.f32.mxu0 0.0
      %1031 = vmatmul.mubr.f32.gmra.mrb[0].mxu0 %v911
      %v1032 = vpop.f32.mrb[0].mxu0
      %v1033 = vadd.f32 %v897, %v1032
      %v1034 = vpop.f32.mrb[0].mxu0
      %1035 = vmatprep.mubr.f32.mxu0 0.0
      %1036 = vmatmul.mubr.f32.gmra.mrb[0].mxu0 %v914
      %v1037 = vpop.f32.mrb[0].mxu0
      %v1038 = vadd.f32 %v897, %v1037
      %v1039 = vpop.f32.mrb[0].mxu0
      %1040 = vmatprep.mubr.f32.mxu0 0.0
      %1041 = vmatmul.mubr.f32.gmra.mrb[0].mxu0 %v917
      %v1042 = vpop.f32.mrb[0].mxu0
      %v1043 = vadd.f32 %v897, %v1042
      %v1044 = vpop.f32.mrb[0].mxu0
      %1045 = vmatprep.mubr.f32.mxu0 0.0
      %1046 = vmatmul.mubr.f32.gmra.mrb[0].mxu0 %v920
      %v1047 = vpop.f32.mrb[0].mxu0
      %v1048 = vadd.f32 %v897, %v1047
      %v1049 = vpop.f32.mrb[0].mxu0
      %1050 = vmatprep.mubr.f32.mxu0 0.0
      %1051 = vmatmul.mubr.f32.gmra.mrb[0].mxu0 %v923
      %v1052 = vpop.f32.mrb[0].mxu0
      %v1053 = vadd.f32 %v897, %v1052
      %v1054 = vpop.f32.mrb[0].mxu0
      %1055 = vmatprep.mubr.f32.mxu0 0.0
      %1056 = vmatmul.mubr.f32.gmra.mrb[0].mxu0 %v926
      %v1057 = vpop.f32.mrb[0].mxu0
      %v1058 = vadd.f32 %v897, %v1057
      %v1059 = vpop.f32.mrb[0].mxu0
      %1060 = vmatprep.mubr.f32.mxu0 0.0
      %1061 = vmatmul.mubr.f32.gmra.mrb[0].mxu0 %v929
      %v1062 = vpop.f32.mrb[0].mxu0
      %v1063 = vadd.f32 %v897, %v1062
      %v1064 = vpop.f32.mrb[0].mxu0
      %1065 = vmatprep.mubr.f32.mxu0 0.0
      %1066 = vmatmul.mubr.f32.gmra.mrb[0].mxu0 %v932
      %v1067 = vpop.f32.mrb[0].mxu0
      %v1068 = vadd.f32 %v897, %v1067
      %v1069 = vpop.f32.mrb[0].mxu0
      %1070 = vmatprep.mubr.f32.mxu0 0.0
      %1071 = vmatmul.mubr.f32.gmra.mrb[0].mxu0 %v935
      %v1072 = vpop.f32.mrb[0].mxu0
      %v1073 = vadd.f32 %v897, %v1072
      %v1074 = vpop.f32.mrb[0].mxu0
      %1075 = vmatprep.mubr.f32.mxu0 0.0
      %1076 = vmatmul.mubr.f32.gmra.mrb[0].mxu0 %v938
      %v1077 = vpop.f32.mrb[0].mxu0
      %v1078 = vadd.f32 %v897, %v1077
      %v1079 = vpop.f32.mrb[0].mxu0
      %1080 = vmatprep.mubr.f32.mxu0 0.0
      %1081 = vmatmul.mubr.f32.gmra.mrb[0].mxu0 %v941
      %v1082 = vpop.f32.mrb[0].mxu0
      %v1083 = vadd.f32 %v897, %v1082
      %v1084 = vpop.f32.mrb[0].mxu0
      %1085 = vmatprep.mubr.f32.mxu0 0.0
      %1086 = vmatmul.mubr.f32.gmra.mrb[0].mxu0 %v944
      %v1087 = vpop.f32.mrb[0].mxu0
      %v1088 = vadd.f32 %v897, %v1087
      %v1089 = vpop.f32.mrb[0].mxu0
      %1090 = vdwg.mxu0
      %v1091 = vmax.f32 %v1013, 0.0
      %v1092 = vmax.f32 %v1018, 0.0
      %v1093 = vmax.f32 %v1023, 0.0
      %v1094 = vmax.f32 %v1028, 0.0
      %v1095 = vmax.f32 %v1033, 0.0
      %v1096 = vmax.f32 %v1038, 0.0
      %v1097 = vmax.f32 %v1043, 0.0
      %v1098 = vmax.f32 %v1048, 0.0
      %v1099 = vmax.f32 %v1053, 0.0
      %v1100 = vmax.f32 %v1058, 0.0
      %v1101 = vmax.f32 %v1063, 0.0
      %v1102 = vmax.f32 %v1068, 0.0
      %v1103 = vmax.f32 %v1073, 0.0
      %v1104 = vmax.f32 %v1078, 0.0
      %v1105 = vmax.f32 %v1083, 0.0
      %v1106 = vmax.f32 %v1088, 0.0
      %v1107 = vlaneseq
      %v1108 = vshrl.u32 %v1107, 7
      %v1109 = vsub.s32 0, %v1108
      %v1110 = vrot.slane %v250, %v1109
      %v1111 = vmul.f32 %v1091, %v1110
      %v1112 = vmul.f32 %v1092, %v1110
      %v1113 = vmul.f32 %v1093, %v1110
      %v1114 = vmul.f32 %v1094, %v1110
      %v1115 = vmul.f32 %v1095, %v1110
      %v1116 = vmul.f32 %v1096, %v1110
      %v1117 = vmul.f32 %v1097, %v1110
      %v1118 = vmul.f32 %v1098, %v1110
      %v1119 = vmul.f32 %v1099, %v1110
      %v1120 = vmul.f32 %v1100, %v1110
      %v1121 = vmul.f32 %v1101, %v1110
      %v1122 = vmul.f32 %v1102, %v1110
      %v1123 = vmul.f32 %v1103, %v1110
      %v1124 = vmul.f32 %v1104, %v1110
      %v1125 = vmul.f32 %v1105, %v1110
      %v1126 = vmul.f32 %v1106, %v1110
      %v1127 = vsel %vm664, %v1111, 0.0
      %1128 = vadd.xlane.f32.xlu0 %v1127
      %v1129 = vpop.xlane.xlu0 %1128
      %v1130 = vsel %vm664, %v1112, 0.0
      %1131 = vadd.xlane.f32.xlu0 %v1130
      %v1132 = vpop.xlane.xlu0 %1131
      %v1133 = vsel %vm664, %v1113, 0.0
      %1134 = vadd.xlane.f32.xlu0 %v1133
      %v1135 = vpop.xlane.xlu0 %1134
      %v1136 = vsel %vm664, %v1114, 0.0
      %1137 = vadd.xlane.f32.xlu0 %v1136
      %v1138 = vpop.xlane.xlu0 %1137
      %v1139 = vsel %vm664, %v1115, 0.0
      %1140 = vadd.xlane.f32.xlu0 %v1139
      %v1141 = vpop.xlane.xlu0 %1140
      %v1142 = vsel %vm664, %v1116, 0.0
      %1143 = vadd.xlane.f32.xlu0 %v1142
      %v1144 = vpop.xlane.xlu0 %1143
      %v1145 = vsel %vm664, %v1117, 0.0
      %1146 = vadd.xlane.f32.xlu0 %v1145
      %v1147 = vpop.xlane.xlu0 %1146
      %v1148 = vsel %vm664, %v1118, 0.0
      %1149 = vadd.xlane.f32.xlu0 %v1148
      %v1150 = vpop.xlane.xlu0 %1149
      %v1151 = vsel %vm664, %v1119, 0.0
      %1152 = vadd.xlane.f32.xlu0 %v1151
      %v1153 = vpop.xlane.xlu0 %1152
      %v1154 = vsel %vm664, %v1120, 0.0
      %1155 = vadd.xlane.f32.xlu0 %v1154
      %v1156 = vpop.xlane.xlu0 %1155
      %v1157 = vsel %vm664, %v1121, 0.0
      %1158 = vadd.xlane.f32.xlu0 %v1157
      %v1159 = vpop.xlane.xlu0 %1158
      %v1160 = vsel %vm664, %v1122, 0.0
      %1161 = vadd.xlane.f32.xlu0 %v1160
      %v1162 = vpop.xlane.xlu0 %1161
      %v1163 = vsel %vm664, %v1123, 0.0
      %1164 = vadd.xlane.f32.xlu0 %v1163
      %v1165 = vpop.xlane.xlu0 %1164
      %v1166 = vsel %vm664, %v1124, 0.0
      %1167 = vadd.xlane.f32.xlu0 %v1166
      %v1168 = vpop.xlane.xlu0 %1167
      %v1169 = vsel %vm664, %v1125, 0.0
      %1170 = vadd.xlane.f32.xlu0 %v1169
      %v1171 = vpop.xlane.xlu0 %1170
      %v1172 = vsel %vm664, %v1126, 0.0
      %1173 = vadd.xlane.f32.xlu0 %v1172
      %v1174 = vpop.xlane.xlu0 %1173
      %v1175 = vlaneseq
      %v1176 = vshrl.u32 %v1175, 7
      %v1177 = vsub.s32 0, %v1176
      %v1178 = vrot.slane %v251, %v1177
      %v1179 = vadd.f32 %v1129, %v1178
      %v1180 = vadd.f32 %v1132, %v1178
      %v1181 = vadd.f32 %v1135, %v1178
      %v1182 = vadd.f32 %v1138, %v1178
      %v1183 = vadd.f32 %v1141, %v1178
      %v1184 = vadd.f32 %v1144, %v1178
      %v1185 = vadd.f32 %v1147, %v1178
      %v1186 = vadd.f32 %v1150, %v1178
      %v1187 = vadd.f32 %v1153, %v1178
      %v1188 = vadd.f32 %v1156, %v1178
      %v1189 = vadd.f32 %v1159, %v1178
      %v1190 = vadd.f32 %v1162, %v1178
      %v1191 = vadd.f32 %v1165, %v1178
      %v1192 = vadd.f32 %v1168, %v1178
      %v1193 = vadd.f32 %v1171, %v1178
      %v1194 = vadd.f32 %v1174, %v1178
      %vm1195 = vcmask 7168
      %1196 = vst.msk [vmem:[%s194] sm:$0xff] %vm1195, %v1179
      %1197 = vst.msk [vmem:[%s194 + $0x8] sm:$0xff] %vm1195, %v1180
      %1198 = vst.msk [vmem:[%s194 + $0x10] sm:$0xff] %vm1195, %v1181
      %1199 = vst.msk [vmem:[%s194 + $0x18] sm:$0xff] %vm1195, %v1182
      %1200 = vst.msk [vmem:[%s194 + $0x20] sm:$0xff] %vm1195, %v1183
      %1201 = vst.msk [vmem:[%s194 + $0x28] sm:$0xff] %vm1195, %v1184
      %1202 = vst.msk [vmem:[%s194 + $0x30] sm:$0xff] %vm1195, %v1185
      %1203 = vst.msk [vmem:[%s194 + $0x38] sm:$0xff] %vm1195, %v1186
      %1204 = vst.msk [vmem:[%s194 + $0x40] sm:$0xff] %vm1195, %v1187
      %1205 = vst.msk [vmem:[%s194 + $0x48] sm:$0xff] %vm1195, %v1188
      %1206 = vst.msk [vmem:[%s194 + $0x50] sm:$0xff] %vm1195, %v1189
      %1207 = vst.msk [vmem:[%s194 + $0x58] sm:$0xff] %vm1195, %v1190
      %1208 = vst.msk [vmem:[%s194 + $0x60] sm:$0xff] %vm1195, %v1191
      %1209 = vst.msk [vmem:[%s194 + $0x68] sm:$0xff] %vm1195, %v1192
      %1210 = vst.msk [vmem:[%s194 + $0x70] sm:$0xff] %vm1195, %v1193
      %1211 = vst.msk [vmem:[%s194 + $0x78] sm:$0xff] %vm1195, %v1194
      %s1212 = smul.u32 16, %s14
      %p1213 = scmp.lt.s32.totalorder %s1212, 31
      %s1214 = scalar_select %p1213, %s1212, 31
      %s1215 = smul.addr %s1214, 8
      %s1216 = scalar_lea.vmem %s3, %s1215
      // Predicated region
      $region33: #{_lambda_.1} parent=31 // pred_check
        %p1217 = pneg %p105
      $region34: #{_lambda_.1} parent=31 // pred_check_branch
        %1219 = sbr.rel (%p1217) target = $region36
      $region35: #{_lambda_.1} parent=31 // pred_region
        %s1220 = smul.u32 16, %s14
      $region36: #{_lambda_.1} parent=31 // pred_fallthru
        _
    $region32: #{_lambda_.1} parent=5 // pred_fallthru
      _
    %p1221 = scmp.le.s32.totalorder 2, %s9
    // Predicated region
    $region37: #{_lambda_.1} parent=5 // pred_check
      %p1222 = pneg %p1221
    $region38: #{_lambda_.1} parent=5 // pred_check_branch
      %1224 = sbr.rel (%p1222) target = $region40
    $region39: #{_lambda_.1} parent=5 // pred_region
      %s1225 = ssub.s32 %s9, 2
      // Predicated region
      $region41: #{_lambda_.1} parent=39 // pred_check
        %p1226 = pneg %p111
      $region42: #{_lambda_.1} parent=39 // pred_check_branch
        %1228 = sbr.rel (%p1226) target = $region44
      $region43: #{_lambda_.1} parent=39 // pred_region
        %s1229 = smul.u32 16, %s15
        %p1230 = scmp.lt.s32.totalorder %s1229, 31
        %s1231 = scalar_select %p1230, %s1229, 31
        %s1232 = smul.addr %s1231, 8
        %s1233 = scalar_lea.vmem %s3, %s1232
      $region44: #{_lambda_.1} parent=39 // pred_fallthru
        _
    $region40: #{_lambda_.1} parent=5 // pred_fallthru
      _
  $region6: #{_lambda_.1} parent=0 // loop_footer
    %s13 = sadd.s32 1, %s9
  $region7: #{_lambda_.1} parent=0 // loop_footer_branch
    %8 = sbr.rel target = $region3
  $region8: #{_lambda_.1} parent=0 // loop_exit
    _

</llo_original>
